<compile_context>
chip_gen: v5e
topology: v5e:2x2
jax: 0.10.0
libtpu: 0.0.40
codegen_flags: <defaults>
</compile_context>

<pallas_src>
import functools

import jax
import jax.numpy as jnp
from jax.experimental import pallas as pl
from jax.experimental.pallas import tpu as pltpu

ROW_TILE = 256   # dst/src row tile (MXU-filling on v6e/v7x, (8,128)-aligned)
LANE = 128       # output-feature padding for lane-dense stores


def _round_up(v, m):
    return ((v + m - 1) // m) * m


def _pad2(a, rows, cols):
    r, c = a.shape
    return jnp.pad(a, ((0, rows - r), (0, cols - c)))


# ------------------------------------------------------------------ XW = X @ W precompute
def _xw_kernel(x_ref, w_ref, out_ref):
    out_ref[...] = jnp.dot(x_ref[...], w_ref[...],
                           preferred_element_type=jnp.float32).astype(out_ref.dtype)


def compute_xw(x, w):
    """Row-tiled X @ W, computed once per layer, emitted in bf16 for the aggregation."""
    n, fin = x.shape
    fout = w.shape[1]
    return pl.pallas_call(
        _xw_kernel,
        out_shape=jax.ShapeDtypeStruct((n, fout), jnp.bfloat16),
        grid=(n // ROW_TILE,),
        in_specs=[
            pl.BlockSpec((ROW_TILE, fin), lambda i: (i, 0)),   # fin untiled (full dim, no 128 pad)
            pl.BlockSpec((fin, fout),     lambda i: (0, 0)),   # W resident
        ],
        out_specs=pl.BlockSpec((ROW_TILE, fout), lambda i: (i, 0)),
        compiler_params=pltpu.CompilerParams(dimension_semantics=("parallel",)),
        cost_estimate=pl.CostEstimate(flops=2 * n * fin * fout, transcendentals=0,
                                      bytes_accessed=n * fin * 4 + fin * fout * 4 + n * fout * 2),
    )(x, w)


# ----------------------------------------------------------------- fused aggregation kernels
def _agg_kernel(adj_ref, xw_ref, scale_ref, shift_ref, out_ref, *, apply_relu):
    # grid = (dst_tiles, src_tiles); src axis (k) is the reduction axis.
    # out block index is (i, 0): resident across k -> used directly as the accumulator.
    k = pl.program_id(1)

    @pl.when(k == 0)
    def _():
        out_ref[...] = jnp.zeros_like(out_ref)

    out_ref[...] += jnp.dot(adj_ref[...], xw_ref[...],
                            preferred_element_type=jnp.float32)

    @pl.when(k == pl.num_programs(1) - 1)
    def _():
        # Fused epilogue: conv bias + BatchNorm(eval) pre-folded into scale/shift.
        y = out_ref[...] * scale_ref[...] + shift_ref[...]
        if apply_relu:
            y = jnp.maximum(y, 0.0)
        out_ref[...] = y                       # single lane-dense full-width store


def _agg_skip_kernel(adj_ref, xw_ref, skip_ref, scale_ref, shift_ref, out_ref,
                     *, skip_coefficient):
    k = pl.program_id(1)

    @pl.when(k == 0)
    def _():
        out_ref[...] = jnp.zeros_like(out_ref)

    out_ref[...] += jnp.dot(adj_ref[...], xw_ref[...],
                            preferred_element_type=jnp.float32)

    @pl.when(k == pl.num_programs(1) - 1)
    def _():
        y = out_ref[...] * scale_ref[...] + shift_ref[...] \
            + skip_coefficient * skip_ref[...]
        out_ref[...] = jnp.maximum(y, 0.0)


def _agg_cost(n, fout):
    return pl.CostEstimate(
        flops=2 * n * n * fout,
        transcendentals=0,
        bytes_accessed=n * n * 2 + n * fout * 2 + n * fout * 4,  # adj bf16 + xw bf16 + out f32
    )


def gcn_aggregate(adj, xw, scale, shift, *, apply_relu):
    n = adj.shape[0]
    fout = xw.shape[1]
    kernel = functools.partial(_agg_kernel, apply_relu=apply_relu)
    return pl.pallas_call(
        kernel,
        out_shape=jax.ShapeDtypeStruct((n, fout), jnp.float32),
        grid=(n // ROW_TILE, n // ROW_TILE),
        in_specs=[
            pl.BlockSpec((ROW_TILE, ROW_TILE), lambda i, k: (i, k)),   # Ahat[dst, src] bf16
            pl.BlockSpec((ROW_TILE, fout),     lambda i, k: (k, 0)),   # XW src rows bf16
            pl.BlockSpec((1, fout),            lambda i, k: (0, 0)),   # scale (f32)
            pl.BlockSpec((1, fout),            lambda i, k: (0, 0)),   # shift (f32)
        ],
        out_specs=pl.BlockSpec((ROW_TILE, fout), lambda i, k: (i, 0)),
        compiler_params=pltpu.CompilerParams(
            dimension_semantics=("parallel", "arbitrary")),
        cost_estimate=_agg_cost(n, fout),
    )(adj, xw, scale, shift)


def gcn_aggregate_skip(adj, xw, skip, scale, shift, *, skip_coefficient):
    n = adj.shape[0]
    fout = xw.shape[1]
    kernel = functools.partial(_agg_skip_kernel,
                               skip_coefficient=float(skip_coefficient))
    return pl.pallas_call(
        kernel,
        out_shape=jax.ShapeDtypeStruct((n, fout), jnp.float32),
        grid=(n // ROW_TILE, n // ROW_TILE),
        in_specs=[
            pl.BlockSpec((ROW_TILE, ROW_TILE), lambda i, k: (i, k)),   # Ahat[dst, src] bf16
            pl.BlockSpec((ROW_TILE, fout),     lambda i, k: (k, 0)),   # XW src rows bf16
            pl.BlockSpec((ROW_TILE, fout),     lambda i, k: (i, 0)),   # x_skip dst rows (f32, resident)
            pl.BlockSpec((1, fout),            lambda i, k: (0, 0)),   # scale
            pl.BlockSpec((1, fout),            lambda i, k: (0, 0)),   # shift
        ],
        out_specs=pl.BlockSpec((ROW_TILE, fout), lambda i, k: (i, 0)),
        compiler_params=pltpu.CompilerParams(
            dimension_semantics=("parallel", "arbitrary")),
        cost_estimate=_agg_cost(n, fout),
    )(adj, xw, skip, scale, shift)


# -------------------------------------------------------------------------- preprocessing
def build_normalized_adjacency(edge_index, num_nodes):
    # GCNConv default normalization: Ahat = D^-1/2 (A + I) D^-1/2, edge weights = 1.
    # TODO(synk): scatter-based sparse adjacency build has no clean Pallas equivalent;
    # done as plain-JAX preprocessing.
    adj = jnp.zeros((num_nodes, num_nodes), jnp.float32)
    adj = adj.at[edge_index[1], edge_index[0]].set(1.0)   # adj[dst, src] = 1
    idx = jnp.arange(num_nodes)
    adj = adj.at[idx, idx].set(1.0)                       # self loops
    deg = jnp.sum(adj, axis=1)                            # degree (incl. self loop)
    dinv = 1.0 / jnp.sqrt(deg)                            # deg >= 1 always
    return adj * dinv[:, None] * dinv[None, :]


# ---------------------------------------------------------------------------------- model
def gcn_skip_forward(x, edge_index, params, *, skip_coefficient=0.5, eps=1e-5):
    # dropout (eval mode) = identity everywhere.
    n, in_c = x.shape
    adj = build_normalized_adjacency(edge_index, n)

    n_pad = _round_up(max(n, ROW_TILE), ROW_TILE)
    # zero-pad (no spurious edges) and cast the O(N^2) stream to bf16.
    adj_p = _pad2(adj, n_pad, n_pad).astype(jnp.bfloat16)

    ws, bs = params["ws"], params["bs"]
    gammas, betas, rms, rvs = (params["gammas"], params["betas"],
                               params["rms"], params["rvs"])
    n_convs = len(ws)

    def pad_feat(d):
        return _round_up(max(d, LANE), LANE)

    # --- layer 0: GCNConv -> BN(eval) -> ReLU ---
    hid = ws[0].shape[1]
    hid_p = pad_feat(hid)
    x_p = _pad2(x, n_pad, in_c)                           # fin NOT padded to 128
    w0_p = _pad2(ws[0], in_c, hid_p)
    s0 = gammas[0] / jnp.sqrt(rvs[0] + eps)
    shift0 = (bs[0] - rms[0]) * s0 + betas[0]             # folds conv bias + BN
    s0_p = _pad2(s0.reshape(1, -1), 1, hid_p)
    shift0_p = _pad2(shift0.reshape(1, -1), 1, hid_p)
    xw0 = compute_xw(x_p, w0_p)                           # (n_pad, hid_p) bf16
    h = gcn_aggregate(adj_p, xw0, s0_p, shift0_p, apply_relu=True)
    x_skip = h

    # --- middle layers (only when num_layers >= 3): conv -> BN -> +skip -> ReLU ---
    for i in range(1, n_convs - 1):
        si = gammas[i] / jnp.sqrt(rvs[i] + eps)
        shifti = (bs[i] - rms[i]) * si + betas[i]
        wi_p = _pad2(ws[i], hid_p, hid_p)
        si_p = _pad2(si.reshape(1, -1), 1, hid_p)
        shifti_p = _pad2(shifti.reshape(1, -1), 1, hid_p)
        xwi = compute_xw(h, wi_p)
        h = gcn_aggregate_skip(adj_p, xwi, x_skip, si_p, shifti_p,
                               skip_coefficient=skip_coefficient)
        x_skip = h

    # --- last layer: GCNConv only (+ bias) ---
    out_c = ws[-1].shape[1]
    out_p = pad_feat(out_c)
    wl_p = _pad2(ws[-1], hid_p, out_p)
    ones = jnp.ones((1, out_p), jnp.float32)
    bl_p = _pad2(bs[-1].reshape(1, -1), 1, out_p)
    xwl = compute_xw(h, wl_p)
    out = gcn_aggregate(adj_p, xwl, ones, bl_p, apply_relu=False)
    return out[:n, :out_c]


# ------------------------------------------------------------------- pure-JAX f32 reference
def gcn_skip_reference(x, edge_index, params, *, skip_coefficient=0.5, eps=1e-5):
    adj = build_normalized_adjacency(edge_index, x.shape[0])
    ws, bs = params["ws"], params["bs"]
    gammas, betas, rms, rvs = (params["gammas"], params["betas"],
                               params["rms"], params["rvs"])
    h = adj @ (x @ ws[0]) + bs[0]
    h = gammas[0] * (h - rms[0]) / jnp.sqrt(rvs[0] + eps) + betas[0]
    h = jnp.maximum(h, 0.0)
    x_skip = h
    for i in range(1, len(ws) - 1):
        y = adj @ (h @ ws[i]) + bs[i]
        y = gammas[i] * (y - rms[i]) / jnp.sqrt(rvs[i] + eps) + betas[i]
        y = y + skip_coefficient * x_skip
        h = jnp.maximum(y, 0.0)
        x_skip = h
    return adj @ (h @ ws[-1]) + bs[-1]


def init_params(key, in_channels, hidden_channels, out_channels, num_layers):
    n_convs = max(num_layers, 2)
    dims = [in_channels] + [hidden_channels] * (n_convs - 1) + [out_channels]
    ks = jax.random.split(key, 6 * n_convs)
    ws, bs, gammas, betas, rms, rvs = [], [], [], [], [], []
    for li in range(n_convs):
        fan_in, fan_out = dims[li], dims[li + 1]
        k0, k1, k2, k3, k4, _ = ks[6 * li: 6 * li + 6]
        scale = jnp.sqrt(2.0 / (fan_in + fan_out))
        ws.append((scale * jax.random.normal(k0, (fan_in, fan_out))).astype(jnp.float32))
        bs.append(jnp.zeros((fan_out,), jnp.float32))
        if li < n_convs - 1:   # BatchNorm1d for all but the last conv
            gammas.append((1.0 + 0.1 * jax.random.normal(k1, (fan_out,))).astype(jnp.float32))
            betas.append((0.1 * jax.random.normal(k2, (fan_out,))).astype(jnp.float32))
            rms.append((0.1 * jax.random.normal(k3, (fan_out,))).astype(jnp.float32))
            rvs.append((1.0 + 0.1 * jnp.abs(jax.random.normal(k4, (fan_out,)))).astype(jnp.float32))
    return {"ws": ws, "bs": bs, "gammas": gammas, "betas": betas, "rms": rms, "rvs": rvs}


if __name__ == "__main__":
    N = 12
    in_channels, hidden_channels, out_channels = 16, 32, 8
    num_layers = 1            # default config: 2 GCNConvs, middle skip loop never runs
    skip_coefficient = 0.5    # inert for num_layers <= 2
    # dropout = 0.5 is inert in eval mode (identity)

    key = jax.random.PRNGKey(0)
    kx, kp, kp3 = jax.random.split(key, 3)
    x = jax.random.normal(kx, (N, in_channels), jnp.float32)

    # Deterministic undirected ring graph: src -> dst both directions.
    src = jnp.concatenate([jnp.arange(N), (jnp.arange(N) + 1) % N])
    dst = jnp.concatenate([(jnp.arange(N) + 1) % N, jnp.arange(N)])
    edge_index = jnp.stack([src, dst], axis=0)            # [2, 2N]

    params = init_params(kp, in_channels, hidden_channels, out_channels, num_layers)
    out = gcn_skip_forward(x, edge_index, params, skip_coefficient=skip_coefficient)
    out = jax.block_until_ready(out)
    assert out.shape == (N, out_channels)
    assert bool(jnp.all(jnp.isfinite(out)))
    ref = gcn_skip_reference(x, edge_index, params, skip_coefficient=skip_coefficient)
    assert float(jnp.max(jnp.abs(out - ref))) < 0.1   # bf16 adj/XW vs f32 reference

    # Also exercise the fused skip-connection middle-layer kernel (num_layers=3 config).
    params3 = init_params(kp3, in_channels, hidden_channels, out_channels, 3)
    out3 = gcn_skip_forward(x, edge_index, params3, skip_coefficient=skip_coefficient)
    out3 = jax.block_until_ready(out3)
    assert out3.shape == (N, out_channels)
    assert bool(jnp.all(jnp.isfinite(out3)))
    ref3 = gcn_skip_reference(x, edge_index, params3, skip_coefficient=skip_coefficient)
    assert float(jnp.max(jnp.abs(out3 - ref3))) < 0.1

    print("KERNEL_OK")
</pallas_src>

<mosaic_0001>
module attributes {stable_mosaic.version = 11 : i64} {
  func.func @_xw_kernel(%arg0: i32, %arg1: memref<256x16xf32, #tpu.memory_space<vmem>>, %arg2: memref<16x128xf32, #tpu.memory_space<vmem>>, %arg3: memref<256x128xbf16, #tpu.memory_space<vmem>>) attributes {dimension_semantics = [#tpu.dimension_semantics<parallel>], iteration_bounds = array<i64: 1>, scalar_prefetch = 0 : i64, scratch_operands = 0 : i64, tpu.core_type = #tpu.core_type<tc>, window_params = [{transform_indices = @transform_0, window_bounds = array<i64: 256, 16>}, {pipeline_mode = #tpu.pipeline_mode<synchronous>, transform_indices = @transform_1, window_bounds = array<i64: 16, 128>}, {transform_indices = @transform_2, window_bounds = array<i64: 256, 128>}]} {
    %c0 = arith.constant 0 : index
    %c0_0 = arith.constant 0 : index
    %0 = vector.load %arg1[%c0, %c0_0] : memref<256x16xf32, #tpu.memory_space<vmem>>, vector<256x16xf32>
    %c0_1 = arith.constant 0 : index
    %c0_2 = arith.constant 0 : index
    %1 = vector.load %arg2[%c0_1, %c0_2] : memref<16x128xf32, #tpu.memory_space<vmem>>, vector<16x128xf32>
    %cst = arith.constant dense<0.000000e+00> : vector<256x128xf32>
    %2 = tpu.matmul %0, %1, %cst {dimension_numbers = #tpu.dot_dimension_numbers<[1], [0], [0], [1], [0, 0, 1, 1], [], []>} : vector<256x16xf32>, vector<16x128xf32>, vector<256x128xf32> -> vector<256x128xf32>
    %3 = arith.truncf %2 : vector<256x128xf32> to vector<256x128xbf16>
    %c0_3 = arith.constant 0 : index
    %c0_4 = arith.constant 0 : index
    %4 = vector.load %arg3[%c0_3, %c0_4] : memref<256x128xbf16, #tpu.memory_space<vmem>>, vector<256x128xbf16>
    tpu.vector_store %arg3[%c0_3, %c0_4], %3 {strides = array<i32>} : memref<256x128xbf16, #tpu.memory_space<vmem>>, vector<256x128xbf16>,
    return
  }
  func.func @transform_0(%arg0: i32) -> (i32, i32) {
    %c0_i32 = arith.constant 0 : i32
    %c0_i32_0 = arith.constant 0 : i32
    return %arg0, %c0_i32 : i32, i32
  }
  func.func @transform_1(%arg0: i32) -> (i32, i32) {
    %c0_i32 = arith.constant 0 : i32
    %c0_i32_0 = arith.constant 0 : i32
    %c0_i32_1 = arith.constant 0 : i32
    return %c0_i32, %c0_i32_0 : i32, i32
  }
  func.func @transform_2(%arg0: i32) -> (i32, i32) {
    %c0_i32 = arith.constant 0 : i32
    %c0_i32_0 = arith.constant 0 : i32
    return %arg0, %c0_i32 : i32, i32
  }
}

</mosaic_0001>

<llo_original>
// kernel: tpu_custom_call.1
$region0: #{tpu_custom_call.1}
  #allocation0 [shape = 'u32[]', space=smem, size = 0x4, offset = 0x4, fixed_abs, tag = 'smem constant byte address 0x4 - core index']
  #allocation1 [shape = 'u32[72,128]{1,0:T(1,128)}', space=vmem, size = 0x9000, scoped, tag = 'internal scratch']
  %s0 = inlined_call_operand.vmem [shape: f32[256,16], index: 0, kind: input, shape index: {}]
  %s1 = inlined_call_operand.vmem [shape: f32[16,128], index: 1, kind: input, shape index: {}]
  %s2 = inlined_call_operand.hbm [shape: bf16[256,128], index: 2, kind: output, shape index: {}]
  %s3 = sld [smem:[#allocation0]]
  $region18: #{tpu_custom_call.1} parent=0
    _
  %s5 = ssub.s32 1, %s3
  %s6 = scalar_select 0, %s5, %s3
  $region1: #{tpu_custom_call.1} parent=0
    #allocation2 [shape = 'u8[65536]{0}', space=vmem, size = 0x10000, scoped, tag = 'output window, operand 0, single buffered']
    #allocation3 [shape = 's32[1]{0}', space=sflag, size = 0x4, scoped, tag = 'scoped memory for tpu_custom_call.1']
    %7 = vsyncpa [#allocation3], 0
    // Predicated region
    $region2: #{tpu_custom_call.1} parent=1 // pred_check
      _
    $region3: #{tpu_custom_call.1} parent=1 // pred_check_branch
      %9 = sbr.rel (0) target = $region5
    $region4: #{tpu_custom_call.1} parent=1 // pred_region
      _
    $region5: #{tpu_custom_call.1} parent=1 // pred_fallthru
      _
    // Predicated region
    $region6: #{tpu_custom_call.1} parent=1 // pred_check
      _
    $region7: #{tpu_custom_call.1} parent=1 // pred_check_branch
      %11 = sbr.rel (0) target = $region9
    $region8: #{tpu_custom_call.1} parent=1 // pred_region
      _
    $region9: #{tpu_custom_call.1} parent=1 // pred_fallthru
      _
    %v12 = vld [vmem:[%s0] sm:$0xff]
    %v13 = vld [vmem:[%s0 + $0x8] sm:$0xff]
    %v14 = vld [vmem:[%s0 + $0x10] sm:$0xff]
    %v15 = vld [vmem:[%s0 + $0x18] sm:$0xff]
    %v16 = vld [vmem:[%s0 + $0x20] sm:$0xff]
    %v17 = vld [vmem:[%s0 + $0x28] sm:$0xff]
    %v18 = vld [vmem:[%s0 + $0x30] sm:$0xff]
    %v19 = vld [vmem:[%s0 + $0x38] sm:$0xff]
    %v20 = vld [vmem:[%s0 + $0x40] sm:$0xff]
    %v21 = vld [vmem:[%s0 + $0x48] sm:$0xff]
    %v22 = vld [vmem:[%s0 + $0x50] sm:$0xff]
    %v23 = vld [vmem:[%s0 + $0x58] sm:$0xff]
    %v24 = vld [vmem:[%s0 + $0x60] sm:$0xff]
    %v25 = vld [vmem:[%s0 + $0x68] sm:$0xff]
    %v26 = vld [vmem:[%s0 + $0x70] sm:$0xff]
    %v27 = vld [vmem:[%s0 + $0x78] sm:$0xff]
    %v28 = vld [vmem:[%s0 + $0x80] sm:$0xff]
    %v29 = vld [vmem:[%s0 + $0x88] sm:$0xff]
    %v30 = vld [vmem:[%s0 + $0x90] sm:$0xff]
    %v31 = vld [vmem:[%s0 + $0x98] sm:$0xff]
    %v32 = vld [vmem:[%s0 + $0xa0] sm:$0xff]
    %v33 = vld [vmem:[%s0 + $0xa8] sm:$0xff]
    %v34 = vld [vmem:[%s0 + $0xb0] sm:$0xff]
    %v35 = vld [vmem:[%s0 + $0xb8] sm:$0xff]
    %v36 = vld [vmem:[%s0 + $0xc0] sm:$0xff]
    %v37 = vld [vmem:[%s0 + $0xc8] sm:$0xff]
    %v38 = vld [vmem:[%s0 + $0xd0] sm:$0xff]
    %v39 = vld [vmem:[%s0 + $0xd8] sm:$0xff]
    %v40 = vld [vmem:[%s0 + $0xe0] sm:$0xff]
    %v41 = vld [vmem:[%s0 + $0xe8] sm:$0xff]
    %v42 = vld [vmem:[%s0 + $0xf0] sm:$0xff]
    %v43 = vld [vmem:[%s0 + $0xf8] sm:$0xff]
    %v44 = vld [vmem:[%s1] sm:$0xff]
    %v45 = vld [vmem:[%s1 + $0x8] sm:$0xff]
    %vm46 = vcmask 130048
    %v48 = vsel %vm46, %v12, 0
    %v51 = vsel %vm46, %v13, 0
    %v54 = vsel %vm46, %v14, 0
    %v57 = vsel %vm46, %v15, 0
    %v60 = vsel %vm46, %v16, 0
    %v63 = vsel %vm46, %v17, 0
    %v66 = vsel %vm46, %v18, 0
    %v69 = vsel %vm46, %v19, 0
    %v72 = vsel %vm46, %v20, 0
    %v75 = vsel %vm46, %v21, 0
    %v78 = vsel %vm46, %v22, 0
    %v81 = vsel %vm46, %v23, 0
    %v84 = vsel %vm46, %v24, 0
    %v87 = vsel %vm46, %v25, 0
    %v90 = vsel %vm46, %v26, 0
    %v93 = vsel %vm46, %v27, 0
    %v96 = vsel %vm46, %v28, 0
    %v99 = vsel %vm46, %v29, 0
    %v102 = vsel %vm46, %v30, 0
    %v105 = vsel %vm46, %v31, 0
    %v108 = vsel %vm46, %v32, 0
    %v111 = vsel %vm46, %v33, 0
    %v114 = vsel %vm46, %v34, 0
    %v117 = vsel %vm46, %v35, 0
    %v120 = vsel %vm46, %v36, 0
    %v123 = vsel %vm46, %v37, 0
    %v126 = vsel %vm46, %v38, 0
    %v129 = vsel %vm46, %v39, 0
    %v132 = vsel %vm46, %v40, 0
    %v135 = vsel %vm46, %v41, 0
    %v138 = vsel %vm46, %v42, 0
    %v141 = vsel %vm46, %v43, 0
    %143 = vmatpush.msra.mxu0 0.0
    %144 = vmatpush.msra.mxu0 0.0
    %145 = vmatpush.msra.mxu0 0.0
    %146 = vmatpush.msra.mxu0 0.0
    %147 = vmatpush.msra.mxu0 0.0
    %148 = vmatpush.msra.mxu0 0.0
    %149 = vmatpush.msra.mxu0 0.0
    %150 = vmatpush.msra.mxu0 0.0
    %151 = vmatpush.msra.mxu0 0.0
    %152 = vmatpush.msra.mxu0 0.0
    %153 = vmatpush.msra.mxu0 0.0
    %154 = vmatpush.msra.mxu0 0.0
    %155 = vmatpush.msra.mxu0 0.0
    %156 = vmatpush.msra.mxu0 0.0
    %157 = vmatpush.msra.mxu0 %v45
    %158 = vmatpush.msra.mxu0 %v44
    %159 = vmatmul.f32.gmra.mxu0 %v48
    %v160 = vpop.f32.mrf.mxu0
    %v161 = vadd.f32 0.0, %v160
    %162 = vmatmul.f32.gmra.mxu0 %v51
    %v163 = vpop.f32.mrf.mxu0
    %v164 = vadd.f32 0.0, %v163
    %165 = vmatmul.f32.gmra.mxu0 %v54
    %v166 = vpop.f32.mrf.mxu0
    %v167 = vadd.f32 0.0, %v166
    %168 = vmatmul.f32.gmra.mxu0 %v57
    %v169 = vpop.f32.mrf.mxu0
    %v170 = vadd.f32 0.0, %v169
    %171 = vmatmul.f32.gmra.mxu0 %v60
    %v172 = vpop.f32.mrf.mxu0
    %v173 = vadd.f32 0.0, %v172
    %174 = vmatmul.f32.gmra.mxu0 %v63
    %v175 = vpop.f32.mrf.mxu0
    %v176 = vadd.f32 0.0, %v175
    %177 = vmatmul.f32.gmra.mxu0 %v66
    %v178 = vpop.f32.mrf.mxu0
    %v179 = vadd.f32 0.0, %v178
    %180 = vmatmul.f32.gmra.mxu0 %v69
    %v181 = vpop.f32.mrf.mxu0
    %v182 = vadd.f32 0.0, %v181
    %183 = vmatmul.f32.gmra.mxu0 %v72
    %v184 = vpop.f32.mrf.mxu0
    %v185 = vadd.f32 0.0, %v184
    %186 = vmatmul.f32.gmra.mxu0 %v75
    %v187 = vpop.f32.mrf.mxu0
    %v188 = vadd.f32 0.0, %v187
    %189 = vmatmul.f32.gmra.mxu0 %v78
    %v190 = vpop.f32.mrf.mxu0
    %v191 = vadd.f32 0.0, %v190
    %192 = vmatmul.f32.gmra.mxu0 %v81
    %v193 = vpop.f32.mrf.mxu0
    %v194 = vadd.f32 0.0, %v193
    %195 = vmatmul.f32.gmra.mxu0 %v84
    %v196 = vpop.f32.mrf.mxu0
    %v197 = vadd.f32 0.0, %v196
    %198 = vmatmul.f32.gmra.mxu0 %v87
    %v199 = vpop.f32.mrf.mxu0
    %v200 = vadd.f32 0.0, %v199
    %201 = vmatmul.f32.gmra.mxu0 %v90
    %v202 = vpop.f32.mrf.mxu0
    %v203 = vadd.f32 0.0, %v202
    %204 = vmatmul.f32.gmra.mxu0 %v93
    %v205 = vpop.f32.mrf.mxu0
    %v206 = vadd.f32 0.0, %v205
    %207 = vmatmul.f32.gmra.mxu0 %v96
    %v208 = vpop.f32.mrf.mxu0
    %v209 = vadd.f32 0.0, %v208
    %210 = vmatmul.f32.gmra.mxu0 %v99
    %v211 = vpop.f32.mrf.mxu0
    %v212 = vadd.f32 0.0, %v211
    %213 = vmatmul.f32.gmra.mxu0 %v102
    %v214 = vpop.f32.mrf.mxu0
    %v215 = vadd.f32 0.0, %v214
    %216 = vmatmul.f32.gmra.mxu0 %v105
    %v217 = vpop.f32.mrf.mxu0
    %v218 = vadd.f32 0.0, %v217
    %219 = vmatmul.f32.gmra.mxu0 %v108
    %v220 = vpop.f32.mrf.mxu0
    %v221 = vadd.f32 0.0, %v220
    %222 = vmatmul.f32.gmra.mxu0 %v111
    %v223 = vpop.f32.mrf.mxu0
    %v224 = vadd.f32 0.0, %v223
    %225 = vmatmul.f32.gmra.mxu0 %v114
    %v226 = vpop.f32.mrf.mxu0
    %v227 = vadd.f32 0.0, %v226
    %228 = vmatmul.f32.gmra.mxu0 %v117
    %v229 = vpop.f32.mrf.mxu0
    %v230 = vadd.f32 0.0, %v229
    %231 = vmatmul.f32.gmra.mxu0 %v120
    %v232 = vpop.f32.mrf.mxu0
    %v233 = vadd.f32 0.0, %v232
    %234 = vmatmul.f32.gmra.mxu0 %v123
    %v235 = vpop.f32.mrf.mxu0
    %v236 = vadd.f32 0.0, %v235
    %237 = vmatmul.f32.gmra.mxu0 %v126
    %v238 = vpop.f32.mrf.mxu0
    %v239 = vadd.f32 0.0, %v238
    %240 = vmatmul.f32.gmra.mxu0 %v129
    %v241 = vpop.f32.mrf.mxu0
    %v242 = vadd.f32 0.0, %v241
    %243 = vmatmul.f32.gmra.mxu0 %v132
    %v244 = vpop.f32.mrf.mxu0
    %v245 = vadd.f32 0.0, %v244
    %246 = vmatmul.f32.gmra.mxu0 %v135
    %v247 = vpop.f32.mrf.mxu0
    %v248 = vadd.f32 0.0, %v247
    %249 = vmatmul.f32.gmra.mxu0 %v138
    %v250 = vpop.f32.mrf.mxu0
    %v251 = vadd.f32 0.0, %v250
    %252 = vmatmul.f32.gmra.mxu0 %v141
    %v253 = vpop.f32.mrf.mxu0
    %v254 = vadd.f32 0.0, %v253
    %255 = vdwg.mxu0
    %v256 = vpack.c.bf16 %v161, %v161
    %v257 = vpack.c.bf16 %v164, %v164
    %v258 = vpack.c.bf16 %v167, %v167
    %v259 = vpack.c.bf16 %v170, %v170
    %v260 = vpack.c.bf16 %v173, %v173
    %v261 = vpack.c.bf16 %v176, %v176
    %v262 = vpack.c.bf16 %v179, %v179
    %v263 = vpack.c.bf16 %v182, %v182
    %v264 = vpack.c.bf16 %v185, %v185
    %v265 = vpack.c.bf16 %v188, %v188
    %v266 = vpack.c.bf16 %v191, %v191
    %v267 = vpack.c.bf16 %v194, %v194
    %v268 = vpack.c.bf16 %v197, %v197
    %v269 = vpack.c.bf16 %v200, %v200
    %v270 = vpack.c.bf16 %v203, %v203
    %v271 = vpack.c.bf16 %v206, %v206
    %v272 = vpack.c.bf16 %v209, %v209
    %v273 = vpack.c.bf16 %v212, %v212
    %v274 = vpack.c.bf16 %v215, %v215
    %v275 = vpack.c.bf16 %v218, %v218
    %v276 = vpack.c.bf16 %v221, %v221
    %v277 = vpack.c.bf16 %v224, %v224
    %v278 = vpack.c.bf16 %v227, %v227
    %v279 = vpack.c.bf16 %v230, %v230
    %v280 = vpack.c.bf16 %v233, %v233
    %v281 = vpack.c.bf16 %v236, %v236
    %v282 = vpack.c.bf16 %v239, %v239
    %v283 = vpack.c.bf16 %v242, %v242
    %v284 = vpack.c.bf16 %v245, %v245
    %v285 = vpack.c.bf16 %v248, %v248
    %v286 = vpack.c.bf16 %v251, %v251
    %v287 = vpack.c.bf16 %v254, %v254
    %288 = vst [vmem:[#allocation2] sm:$0xf] %v256
    %289 = vst [vmem:[#allocation2 + $0x4] sm:$0xf] %v257
    %290 = vst [vmem:[#allocation2 + $0x8] sm:$0xf] %v258
    %291 = vst [vmem:[#allocation2 + $0xc] sm:$0xf] %v259
    %292 = vst [vmem:[#allocation2 + $0x10] sm:$0xf] %v260
    %293 = vst [vmem:[#allocation2 + $0x14] sm:$0xf] %v261
    %294 = vst [vmem:[#allocation2 + $0x18] sm:$0xf] %v262
    %295 = vst [vmem:[#allocation2 + $0x1c] sm:$0xf] %v263
    %296 = vst [vmem:[#allocation2 + $0x20] sm:$0xf] %v264
    %297 = vst [vmem:[#allocation2 + $0x24] sm:$0xf] %v265
    %298 = vst [vmem:[#allocation2 + $0x28] sm:$0xf] %v266
    %299 = vst [vmem:[#allocation2 + $0x2c] sm:$0xf] %v267
    %300 = vst [vmem:[#allocation2 + $0x30] sm:$0xf] %v268
    %301 = vst [vmem:[#allocation2 + $0x34] sm:$0xf] %v269
    %302 = vst [vmem:[#allocation2 + $0x38] sm:$0xf] %v270
    %303 = vst [vmem:[#allocation2 + $0x3c] sm:$0xf] %v271
    %304 = vst [vmem:[#allocation2 + $0x40] sm:$0xf] %v272
    %305 = vst [vmem:[#allocation2 + $0x44] sm:$0xf] %v273
    %306 = vst [vmem:[#allocation2 + $0x48] sm:$0xf] %v274
    %307 = vst [vmem:[#allocation2 + $0x4c] sm:$0xf] %v275
    %308 = vst [vmem:[#allocation2 + $0x50] sm:$0xf] %v276
    %309 = vst [vmem:[#allocation2 + $0x54] sm:$0xf] %v277
    %310 = vst [vmem:[#allocation2 + $0x58] sm:$0xf] %v278
    %311 = vst [vmem:[#allocation2 + $0x5c] sm:$0xf] %v279
    %312 = vst [vmem:[#allocation2 + $0x60] sm:$0xf] %v280
    %313 = vst [vmem:[#allocation2 + $0x64] sm:$0xf] %v281
    %314 = vst [vmem:[#allocation2 + $0x68] sm:$0xf] %v282
    %315 = vst [vmem:[#allocation2 + $0x6c] sm:$0xf] %v283
    %316 = vst [vmem:[#allocation2 + $0x70] sm:$0xf] %v284
    %317 = vst [vmem:[#allocation2 + $0x74] sm:$0xf] %v285
    %318 = vst [vmem:[#allocation2 + $0x78] sm:$0xf] %v286
    %319 = vst [vmem:[#allocation2 + $0x7c] sm:$0xf] %v287
    // Predicated region
    $region10: #{tpu_custom_call.1} parent=1 // pred_check
      _
    $region11: #{tpu_custom_call.1} parent=1 // pred_check_branch
      %321 = sbr.rel (0) target = $region13
    $region12: #{tpu_custom_call.1} parent=1 // pred_region
      %323 = vsyncadd [#allocation3], 0
      %s324 = sshll.u32 [#allocation2], 4
      %s325 = int_to_ptr.vmem [resolvable:$true] %s324
      %s326 = sshll.u32 %s2, 4
      %s327 = int_to_ptr.hbm [resolvable:$true] %s326
      %332 = dma.vmem_to_hbm [thread:$0]  %s325, 2048, %s327, [#allocation3], 64, 64, 4
    $region13: #{tpu_custom_call.1} parent=1 // pred_fallthru
      _
    // Predicated region
    $region14: #{tpu_custom_call.1} parent=1 // pred_check
      _
    $region15: #{tpu_custom_call.1} parent=1 // pred_check_branch
      %334 = sbr.rel (0) target = $region17
    $region16: #{tpu_custom_call.1} parent=1 // pred_region
      %336 = dma.done [#allocation3], 2048
    $region17: #{tpu_custom_call.1} parent=1 // pred_fallthru
      _
    %337 = vsyncpa [#allocation3], 1

</llo_original>
